<compile_context>
chip_gen: v6e
topology: v6e:2x2x1
jax: 0.10.0
libtpu: 0.0.40
codegen_flags: <defaults>
</compile_context>

<pallas_src>
import functools

import jax
import jax.numpy as jnp
from jax.experimental import pallas as pl
from jax.experimental.pallas import tpu as pltpu

LANE = 128


def _round_up(x, m):
    return (x + m - 1) // m * m


def _sublane_multiple(dtype):
    # bf16 packs 2 rows per sublane, int8/fp8 pack 4: keep row tiles fully
    # packed so stores are unmasked vst.
    return max(8, 32 // jnp.dtype(dtype).itemsize)


def _pick_tile(total, target, multiple):
    """Largest t <= target dividing `total` with t % multiple == 0 (or t == total)."""
    # TODO(synk): if `total` has no small divisor this degenerates to an
    # untiled single-step kernel; pad M / use a masked tail instead.
    cap = max(1, min(total, target))
    for cand in range(cap, 0, -1):
        if total % cand == 0 and (cand % multiple == 0 or cand == total):
            return cand
    return total


_VMEM_LIMIT_CACHE = None


def _vmem_limit_bytes():
    """Scoped-VMEM budget ~= half of physical VMEM (64 MiB v5e/v6e, 32 MiB v7x)."""
    global _VMEM_LIMIT_CACHE
    if _VMEM_LIMIT_CACHE is None:
        limit = 32 * 1024 * 1024
        try:
            cap = int(pltpu.get_tpu_info().vmem_capacity_bytes)
            limit = min(max(cap // 2, 32 * 1024 * 1024), 96 * 1024 * 1024)
        except Exception:
            pass
        _VMEM_LIMIT_CACHE = limit
    return _VMEM_LIMIT_CACHE


# ----------------------------------------------------------------------------
# Kernels
# ----------------------------------------------------------------------------
def _matmul_bias_relu_kernel(x_ref, w_ref, b_ref, o_ref):
    # x: (tm, Cin) any dtype -- cast to the weight dtype in-kernel (fused cast,
    # hidden under the MXU/DMA).  w: (Cin, Cout)  b: (1, Cout)  o: (tm, Cout)
    x = x_ref[...].astype(w_ref.dtype)
    y = jnp.dot(x, w_ref[...], preferred_element_type=jnp.float32)
    o_ref[...] = jnp.maximum(y + b_ref[...], 0.0).astype(o_ref.dtype)


def _matmul_bias_add_relu_kernel(x_ref, w_ref, b_ref, res_ref, o_ref):
    # Same as above plus an f32 residual add before the final ReLU.
    x = x_ref[...].astype(w_ref.dtype)
    y = jnp.dot(x, w_ref[...], preferred_element_type=jnp.float32)
    y = y + b_ref[...] + res_ref[...].astype(jnp.float32)
    o_ref[...] = jnp.maximum(y, 0.0).astype(o_ref.dtype)


def _conv3x3_bias_relu_kernel(x_hbm, w_ref, b_ref, o_ref, xwin_ref, sem,
                              *, dilation, th, w_out, nrows):
    # x_hbm: (N, Hp, Wp, Cin) zero-padded input, left in HBM.
    # w_ref: (3, 3, Cin, Cout) [separate taps] or (3, 3*Cin, Cout) [grouped].
    # b_ref: (1, Cout)  o_ref: (1, th, w_out, Cout)
    # xwin_ref: (nrows, Wp, Cin) VMEM row-window scratch.
    b = pl.program_id(0)
    hi = pl.program_id(1)
    cin = xwin_ref.shape[-1]
    cout = o_ref.shape[-1]
    d = dilation

    # Row-window (+halo) DMA: only `nrows` padded rows live in VMEM at a time,
    # so VMEM scales with th, not the image height.
    cp = pltpu.make_async_copy(x_hbm.at[b, pl.ds(hi * th, nrows)], xwin_ref, sem)
    cp.start()
    cp.wait()

    acc = jnp.zeros((th * w_out, cout), jnp.float32)
    if w_ref.ndim == 4:
        # Large padded Cin: 9 accumulating K=Cin matmuls, no concat/reshape
        # relayout of the taps.
        for ky in range(3):
            for kx in range(3):
                tap = xwin_ref[ky * d: ky * d + th, kx * d: kx * d + w_out, :]
                acc = acc + jnp.dot(tap.reshape(th * w_out, cin), w_ref[ky, kx],
                                    preferred_element_type=jnp.float32)
    else:
        # Small padded Cin (=128): group the 3 ky taps along K (=3*Cin) so the
        # MXU contraction is better filled.
        for kx in range(3):
            taps = [xwin_ref[ky * d: ky * d + th, kx * d: kx * d + w_out, :]
                    for ky in range(3)]
            patch = jnp.concatenate(taps, axis=-1).reshape(th * w_out, 3 * cin)
            acc = acc + jnp.dot(patch, w_ref[kx],
                                preferred_element_type=jnp.float32)

    y = jnp.maximum(acc + b_ref[...], 0.0)
    o_ref[...] = y.reshape(1, th, w_out, cout).astype(o_ref.dtype)


# ----------------------------------------------------------------------------
# Wrappers (tiled pallas_call)
# ----------------------------------------------------------------------------
def conv1x1_bias_relu(x_nhwc, w, bias, *, row_tile, out_dtype=None):
    n, h, wdt, cin = x_nhwc.shape
    cout = w.shape[1]
    m = n * h * wdt
    out_dtype = out_dtype if out_dtype is not None else w.dtype
    mult = max(_sublane_multiple(x_nhwc.dtype), _sublane_multiple(w.dtype),
               _sublane_multiple(out_dtype))
    tm = _pick_tile(m, row_tile, mult)
    x2d = x_nhwc.reshape(m, cin)
    cost = pl.CostEstimate(
        flops=2 * m * cin * cout, transcendentals=0,
        bytes_accessed=(m * cin * x2d.dtype.itemsize
                        + cin * cout * w.dtype.itemsize
                        + m * cout * jnp.dtype(out_dtype).itemsize))
    out2d = pl.pallas_call(
        _matmul_bias_relu_kernel,
        grid=(m // tm,),
        in_specs=[pl.BlockSpec((tm, cin), lambda i: (i, 0)),
                  pl.BlockSpec((cin, cout), lambda i: (0, 0)),
                  pl.BlockSpec((1, cout), lambda i: (0, 0))],
        out_specs=pl.BlockSpec((tm, cout), lambda i: (i, 0)),
        out_shape=jax.ShapeDtypeStruct((m, cout), out_dtype),
        compiler_params=pltpu.CompilerParams(
            dimension_semantics=("parallel",),
            vmem_limit_bytes=_vmem_limit_bytes()),
        cost_estimate=cost,
    )(x2d, w, bias)
    return out2d.reshape(n, h, wdt, cout)


def conv1x1_bias_add_relu(x_nhwc, w, bias, residual_nhwc, *, row_tile,
                          out_dtype=None):
    n, h, wdt, cin = x_nhwc.shape
    cout = w.shape[1]
    m = n * h * wdt
    out_dtype = out_dtype if out_dtype is not None else residual_nhwc.dtype
    mult = max(_sublane_multiple(x_nhwc.dtype), _sublane_multiple(w.dtype),
               _sublane_multiple(out_dtype))
    tm = _pick_tile(m, row_tile, mult)
    x2d = x_nhwc.reshape(m, cin)
    res2d = residual_nhwc.reshape(m, cout)
    cost = pl.CostEstimate(
        flops=2 * m * cin * cout, transcendentals=0,
        bytes_accessed=(m * cin * x2d.dtype.itemsize
                        + cin * cout * w.dtype.itemsize
                        + m * cout * (res2d.dtype.itemsize
                                      + jnp.dtype(out_dtype).itemsize)))
    out2d = pl.pallas_call(
        _matmul_bias_add_relu_kernel,
        grid=(m // tm,),
        in_specs=[pl.BlockSpec((tm, cin), lambda i: (i, 0)),
                  pl.BlockSpec((cin, cout), lambda i: (0, 0)),
                  pl.BlockSpec((1, cout), lambda i: (0, 0)),
                  pl.BlockSpec((tm, cout), lambda i: (i, 0))],
        out_specs=pl.BlockSpec((tm, cout), lambda i: (i, 0)),
        out_shape=jax.ShapeDtypeStruct((m, cout), out_dtype),
        compiler_params=pltpu.CompilerParams(
            dimension_semantics=("parallel",),
            vmem_limit_bytes=_vmem_limit_bytes()),
        cost_estimate=cost,
    )(x2d, w, bias, res2d)
    return out2d.reshape(n, h, wdt, cout)


def conv3x3_bias_relu(x_nhwc, w_conv, bias, *, dilation, h_tile, max_rows=512):
    """3x3 conv (stride 1, padding == dilation) + folded-BN bias + ReLU, NHWC."""
    n, h, wdt, cin = x_nhwc.shape
    cout = w_conv.shape[-1]
    d = dilation
    h_out, w_out = h, wdt                     # stride 1, padding == dilation
    # TODO(synk): fuse this zero-pad into the kernel (DMA only the valid rows
    # and zero the halo borders in the VMEM scratch) to save one HBM pass.
    xpad = jnp.pad(x_nhwc, ((0, 0), (d, d), (d, d), (0, 0)))
    wp = xpad.shape[2]
    # Bound th so the f32 accumulator (th*w_out, cout) stays small (no spills).
    th = _pick_tile(h_out, min(h_tile, max(1, max_rows // max(1, w_out))), 1)
    nrows = th + 2 * d
    kernel = functools.partial(_conv3x3_bias_relu_kernel, dilation=d, th=th,
                               w_out=w_out, nrows=nrows)
    w_ndim = w_conv.ndim
    w_index_map = (lambda b, i: (0,) * w_ndim)
    cost = pl.CostEstimate(
        flops=2 * n * h_out * w_out * (9 * cin) * cout, transcendentals=0,
        bytes_accessed=(xpad.size * xpad.dtype.itemsize
                        + w_conv.size * w_conv.dtype.itemsize
                        + n * h_out * w_out * cout * x_nhwc.dtype.itemsize))
    return pl.pallas_call(
        kernel,
        out_shape=jax.ShapeDtypeStruct((n, h_out, w_out, cout), x_nhwc.dtype),
        grid_spec=pltpu.PrefetchScalarGridSpec(
            num_scalar_prefetch=0,
            grid=(n, h_out // th),
            in_specs=[pl.BlockSpec(memory_space=pl.ANY),
                      pl.BlockSpec(tuple(w_conv.shape), w_index_map),
                      pl.BlockSpec((1, cout), lambda b, i: (0, 0))],
            out_specs=pl.BlockSpec((1, th, w_out, cout),
                                   lambda b, i: (b, i, 0, 0)),
            scratch_shapes=[pltpu.VMEM((nrows, wp, cin), x_nhwc.dtype),
                            pltpu.SemaphoreType.DMA]),
        compiler_params=pltpu.CompilerParams(
            dimension_semantics=("parallel", "parallel"),
            vmem_limit_bytes=_vmem_limit_bytes()),
        cost_estimate=cost,
    )(xpad, w_conv, bias)


# ----------------------------------------------------------------------------
# Parameter preparation (run once) and full bottleneck forward
# ----------------------------------------------------------------------------
def fold_bn(gamma, beta, mean, var, eps=1e-5):
    scale = gamma.astype(jnp.float32) / jnp.sqrt(var.astype(jnp.float32) + eps)
    bias = beta.astype(jnp.float32) - mean.astype(jnp.float32) * scale
    return scale, bias


def prepare_bottleneck_params(params, *, compute_dtype=jnp.bfloat16, eps=1e-5):
    """Fold BN into the conv weights, lane-pad channels, cast.  Run once."""
    planes = params["w1"].shape[1]
    cexp = params["w3"].shape[1]
    P = _round_up(planes, LANE)

    s1, b1 = fold_bn(*params["bn1"], eps=eps)
    s2, b2 = fold_bn(*params["bn2"], eps=eps)
    s3, b3 = fold_bn(*params["bn3"], eps=eps)

    # TODO(synk): folding the BN scale into bf16 weights amplifies quantization
    # error when var is tiny; keep the scale as an f32 epilogue multiply if
    # accuracy is marginal.
    w1 = params["w1"].astype(jnp.float32) * s1[None, :]
    w1 = jnp.pad(w1, ((0, 0), (0, P - planes))).astype(compute_dtype)
    b1p = jnp.pad(b1, (0, P - planes)).reshape(1, P).astype(jnp.float32)

    w2 = params["w2"].astype(jnp.float32) * s2[None, None, None, :]
    w2 = jnp.pad(w2, ((0, 0), (0, 0), (0, P - planes), (0, P - planes)))
    if P >= 256:
        w2 = w2.astype(compute_dtype)                       # (ky, kx, P, P)
    else:
        # Group the 3 ky taps of each kx along K: (kx, 3*P, P).
        w2 = jnp.transpose(w2, (1, 0, 2, 3)).reshape(3, 3 * P, P)
        w2 = w2.astype(compute_dtype)
    b2p = jnp.pad(b2, (0, P - planes)).reshape(1, P).astype(jnp.float32)

    w3 = params["w3"].astype(jnp.float32) * s3[None, :]
    w3 = jnp.pad(w3, ((0, P - planes), (0, 0))).astype(compute_dtype)
    b3p = b3.reshape(1, cexp).astype(jnp.float32)

    return {"w1": w1, "b1": b1p, "w2": w2, "b2": b2p, "w3": w3, "b3": b3p}


def bottleneck_forward(x_nchw, prep, *, stride=1, dilation=1, multi_grid=1,
                       row_tile=512, row_tile_expand=256, h_tile=8):
    """Bottleneck forward (inference BN, downsample=None => stride==1)."""
    assert stride == 1, "downsample=None requires stride == 1"
    cexp = prep["w3"].shape[1]
    assert x_nchw.shape[1] == cexp, "downsample=None requires inplanes == planes*4"

    x = jnp.transpose(x_nchw, (0, 2, 3, 1))            # NCHW -> NHWC (f32)
    d = dilation * multi_grid

    # 1x1 reduce + BN + ReLU (input f32 -> compute-dtype cast fused in-kernel).
    out = conv1x1_bias_relu(x, prep["w1"], prep["b1"], row_tile=row_tile)
    # 3x3 (dilated) + BN + ReLU, row-windowed HBM DMA.
    out = conv3x3_bias_relu(out, prep["w2"], prep["b2"], dilation=d,
                            h_tile=h_tile)
    # 1x1 expand + BN + residual add + ReLU (f32 residual/output for exactness).
    # TODO(synk): optionally stream the residual in bf16 to halve its HBM bytes.
    out = conv1x1_bias_add_relu(out, prep["w3"], prep["b3"], x,
                                row_tile=row_tile_expand, out_dtype=x.dtype)
    return jnp.transpose(out, (0, 3, 1, 2))            # NHWC -> NCHW


# ----------------------------------------------------------------------------
# Pure-JAX reference (correctness check)
# ----------------------------------------------------------------------------
def bottleneck_reference(x_nchw, params, *, stride=1, dilation=1, multi_grid=1):
    def conv(x, w_oihw, stride=1, dilation=1, padding=0):
        return jax.lax.conv_general_dilated(
            x, w_oihw, window_strides=(stride, stride),
            padding=((padding, padding), (padding, padding)),
            rhs_dilation=(dilation, dilation),
            dimension_numbers=("NCHW", "OIHW", "NCHW"))

    def bn(x, gamma, beta, mean, var, eps=1e-5):
        s = gamma / jnp.sqrt(var + eps)
        b = beta - mean * s
        return x * s[None, :, None, None] + b[None, :, None, None]

    w1_oihw = params["w1"].T[:, :, None, None]
    w2_oihw = jnp.transpose(params["w2"], (3, 2, 0, 1))
    w3_oihw = params["w3"].T[:, :, None, None]

    residual = x_nchw
    d = dilation * multi_grid
    out = jax.nn.relu(bn(conv(x_nchw, w1_oihw), *params["bn1"]))
    out = jax.nn.relu(bn(conv(out, w2_oihw, stride=stride, dilation=d, padding=d),
                         *params["bn2"]))
    out = bn(conv(out, w3_oihw), *params["bn3"])
    return jax.nn.relu(out + residual)


# ----------------------------------------------------------------------------
if __name__ == "__main__":
    # Small shapes: inplanes = planes*4 so the downsample=None residual add is valid.
    N, planes, H, W = 2, 4, 16, 16
    inplanes = planes * 4  # 16
    key = jax.random.PRNGKey(0)
    keys = jax.random.split(key, 12)

    x = jax.random.normal(keys[0], (N, inplanes, H, W), jnp.float32)

    params = {
        "w1": jax.random.normal(keys[1], (inplanes, planes), jnp.float32) * 0.1,
        "w2": jax.random.normal(keys[2], (3, 3, planes, planes), jnp.float32) * 0.1,
        "w3": jax.random.normal(keys[3], (planes, planes * 4), jnp.float32) * 0.1,
        "bn1": (jax.random.normal(keys[4], (planes,)) * 0.1 + 1.0,
                jax.random.normal(keys[5], (planes,)) * 0.1,
                jax.random.normal(keys[6], (planes,)) * 0.1,
                jnp.abs(jax.random.normal(keys[7], (planes,))) * 0.1 + 1.0),
        "bn2": (jnp.ones((planes,)), jnp.zeros((planes,)),
                jnp.zeros((planes,)), jnp.ones((planes,))),
        "bn3": (jax.random.normal(keys[8], (planes * 4,)) * 0.1 + 1.0,
                jax.random.normal(keys[9], (planes * 4,)) * 0.1,
                jax.random.normal(keys[10], (planes * 4,)) * 0.1,
                jnp.abs(jax.random.normal(keys[11], (planes * 4,))) * 0.1 + 1.0),
    }

    # Weight prep (BN fold, pad, cast) runs once, outside the forward.
    prep_bf16 = prepare_bottleneck_params(params, compute_dtype=jnp.bfloat16)
    prep_f32 = prepare_bottleneck_params(params, compute_dtype=jnp.float32)

    # Small tiles so the toy shapes actually exercise the multi-step grids.
    out_bf16 = bottleneck_forward(x, prep_bf16, stride=1, dilation=1,
                                  multi_grid=1, row_tile=128,
                                  row_tile_expand=128, h_tile=4)
    out_bf16 = jax.block_until_ready(out_bf16)

    out_f32 = bottleneck_forward(x, prep_f32, stride=1, dilation=1,
                                 multi_grid=1, row_tile=128,
                                 row_tile_expand=128, h_tile=4)
    out_f32 = jax.block_until_ready(out_f32)

    ref = bottleneck_reference(x, params, stride=1, dilation=1, multi_grid=1)

    assert out_f32.shape == (N, planes * 4, H, W)
    assert out_bf16.shape == (N, planes * 4, H, W)
    err_f32 = float(jnp.max(jnp.abs(out_f32 - ref)))
    err_bf16 = float(jnp.max(jnp.abs(out_bf16 - ref)))
    assert jnp.allclose(out_f32, ref, atol=1e-3, rtol=1e-3), err_f32
    assert jnp.allclose(out_bf16, ref, atol=5e-2, rtol=5e-2), err_bf16

    print("KERNEL_OK")
</pallas_src>

<mosaic_0001>
module attributes {stable_mosaic.version = 11 : i64} {
  func.func @_matmul_bias_relu_kernel(%arg0: i32, %arg1: memref<128x16xf32, #tpu.memory_space<vmem>>, %arg2: memref<16x128xbf16, #tpu.memory_space<vmem>>, %arg3: memref<1x128xf32, #tpu.memory_space<vmem>>, %arg4: memref<128x128xbf16, #tpu.memory_space<vmem>>) attributes {dimension_semantics = [#tpu.dimension_semantics<parallel>], iteration_bounds = array<i64: 4>, scalar_prefetch = 0 : i64, scratch_operands = 0 : i64, tpu.core_type = #tpu.core_type<tc>, window_params = [{transform_indices = @transform_0, window_bounds = array<i64: 128, 16>}, {pipeline_mode = #tpu.pipeline_mode<synchronous>, transform_indices = @transform_1, window_bounds = array<i64: 16, 128>}, {pipeline_mode = #tpu.pipeline_mode<synchronous>, transform_indices = @transform_2, window_bounds = array<i64: 1, 128>}, {transform_indices = @transform_3, window_bounds = array<i64: 128, 128>}]} {
    %c0 = arith.constant 0 : index
    %c0_0 = arith.constant 0 : index
    %0 = vector.load %arg1[%c0, %c0_0] : memref<128x16xf32, #tpu.memory_space<vmem>>, vector<128x16xf32>
    %1 = arith.truncf %0 : vector<128x16xf32> to vector<128x16xbf16>
    %c0_1 = arith.constant 0 : index
    %c0_2 = arith.constant 0 : index
    %2 = vector.load %arg2[%c0_1, %c0_2] : memref<16x128xbf16, #tpu.memory_space<vmem>>, vector<16x128xbf16>
    %cst = arith.constant dense<0.000000e+00> : vector<128x128xf32>
    %3 = tpu.matmul %1, %2, %cst {dimension_numbers = #tpu.dot_dimension_numbers<[1], [0], [0], [1], [0, 0, 1, 1], [], []>} : vector<128x16xbf16>, vector<16x128xbf16>, vector<128x128xf32> -> vector<128x128xf32>
    %c0_3 = arith.constant 0 : index
    %c0_4 = arith.constant 0 : index
    %4 = vector.load %arg3[%c0_3, %c0_4] : memref<1x128xf32, #tpu.memory_space<vmem>>, vector<1x128xf32>
    %5 = vector.broadcast %4 : vector<1x128xf32> to vector<128x128xf32>
    %6 = arith.addf %3, %5 : vector<128x128xf32>
    %cst_5 = arith.constant 0.000000e+00 : f32
    %7 = vector.broadcast %cst_5 : f32 to vector<128x128xf32>
    %8 = arith.maximumf %6, %7 : vector<128x128xf32>
    %9 = arith.truncf %8 : vector<128x128xf32> to vector<128x128xbf16>
    %c0_6 = arith.constant 0 : index
    %c0_7 = arith.constant 0 : index
    %10 = vector.load %arg4[%c0_6, %c0_7] : memref<128x128xbf16, #tpu.memory_space<vmem>>, vector<128x128xbf16>
    tpu.vector_store %arg4[%c0_6, %c0_7], %9 {strides = array<i32>} : memref<128x128xbf16, #tpu.memory_space<vmem>>, vector<128x128xbf16>,
    return
  }
  func.func @transform_0(%arg0: i32) -> (i32, i32) {
    %c0_i32 = arith.constant 0 : i32
    %c0_i32_0 = arith.constant 0 : i32
    return %arg0, %c0_i32 : i32, i32
  }
  func.func @transform_1(%arg0: i32) -> (i32, i32) {
    %c0_i32 = arith.constant 0 : i32
    %c0_i32_0 = arith.constant 0 : i32
    %c0_i32_1 = arith.constant 0 : i32
    return %c0_i32, %c0_i32_0 : i32, i32
  }
  func.func @transform_2(%arg0: i32) -> (i32, i32) {
    %c0_i32 = arith.constant 0 : i32
    %c0_i32_0 = arith.constant 0 : i32
    %c0_i32_1 = arith.constant 0 : i32
    return %c0_i32, %c0_i32_0 : i32, i32
  }
  func.func @transform_3(%arg0: i32) -> (i32, i32) {
    %c0_i32 = arith.constant 0 : i32
    %c0_i32_0 = arith.constant 0 : i32
    return %arg0, %c0_i32 : i32, i32
  }
}

</mosaic_0001>

<llo_original>
// kernel: tpu_custom_call.1
$region0: #{tpu_custom_call.1}
  #allocation0 [shape = 'u32[]', space=smem, size = 0x4, offset = 0x4, fixed_abs, tag = 'smem constant byte address 0x4 - core index']
  #allocation1 [shape = 'u32[144,128]{1,0:T(1,128)}', space=vmem, size = 0x12000, scoped, tag = 'internal scratch']
  %s0 = inlined_call_operand.vmem [shape: f32[512,16], index: 0, kind: input, shape index: {}]
  %s1 = inlined_call_operand.vmem [shape: bf16[16,128], index: 1, kind: input, shape index: {}]
  %s2 = inlined_call_operand.vmem [shape: f32[1,128], index: 2, kind: input, shape index: {}]
  %s3 = inlined_call_operand.hbm [shape: bf16[512,128], index: 3, kind: output, shape index: {}]
  %s4 = sld [smem:[#allocation0]]
  $region45: #{tpu_custom_call.1} parent=0
    _
  %s6 = ssub.s32 1, %s4
  %s7 = scalar_select 0, %s6, %s4
  $region1: #{tpu_custom_call.1} parent=0
    #allocation2 [shape = 'u8[65536]{0}', space=vmem, size = 0x10000, scoped, tag = 'output window, operand 0']
    #allocation3 [shape = 's32[2]{0}', space=sflag, size = 0x8, scoped, tag = 'scoped memory for tpu_custom_call.1']
    %8 = vsyncpa [#allocation3], 0
    %s9 = scalar_lea.sflag [#allocation3], 1
    %10 = vsyncpa %s9, 0
    loop: start=0, step=1, limit=6
    $region2: #{tpu_custom_call.1} parent=1 // loop_pre_header
      _
    $region3: #{tpu_custom_call.1} parent=1 // loop_header
      %s12 = sphi 0, %s16
      %p13 = scmp.ge.s32.totalorder %s12, 6
      %s22 = sphi 0, %s24
      %s25 = sphi 0, %s22
      %s26 = sphi 0, %s25
      %s42 = sphi 0, %s26
      %s46 = sphi 0, %s46
      %s48 = sphi 0, %s46
      %s49 = sphi 0, %s48
      %s63 = sphi 0, %s49
      %s67 = sphi 0, %s67
      %s69 = sphi 0, %s67
      %s70 = sphi 0, %s69
      %s84 = sphi 0, %s70
      %s90 = sphi 0, %s92
      %s93 = sphi 0, %s90
      %s94 = sphi 0, %s93
      %s110 = sphi 0, %s94
    $region4: #{tpu_custom_call.1} parent=1 // loop_header_branch
      %15 = sbr.rel (%p13) target = $region8
    $region5: #{tpu_custom_call.1} parent=1 // loop_body
      %s17 = ssub.s32 %s12, 1
      %s18 = ssub.s32 %s12, 2
      %s19 = sadd.s32 %s12, 1
      %s20 = ssub.s32 %s12, %s19
      %p21 = scmp.eq.s32.totalorder %s20, 0
      %s23 = sadd.s32 %s22, 1
      %s24 = scalar_select %p21, %s22, %s23
      %p27 = pneg %p21
      %p28 = scmp.eq.s32.totalorder %s12, 3
      %p29 = por %p27, %p28
      %p30 = scmp.ne.s32.totalorder %s22, %s25
      %p31 = scmp.eq.s32.totalorder %s12, 0
      %p32 = por %p30, %p31
      %p33 = scmp.ne.s32.totalorder %s22, %s25
      %p34 = scmp.eq.s32.totalorder %s17, 3
      %p35 = por %p33, %p34
      %p36 = scmp.ne.s32.totalorder %s25, %s26
      %p37 = scmp.eq.s32.totalorder %s17, 0
      %p38 = por %p36, %p37
      %p39 = scmp.ne.s32.totalorder %s25, %s26
      %p40 = scmp.eq.s32.totalorder %s18, 3
      %p41 = por %p39, %p40
      %p43 = scmp.ne.s32.totalorder %s26, %s42
      %p44 = scmp.eq.s32.totalorder %s18, 0
      %p45 = por %p43, %p44
      %s47 = sadd.s32 %s46, 1
      %p50 = scmp.eq.s32.totalorder %s12, 3
      %p51 = scmp.ne.s32.totalorder %s46, %s48
      %p52 = scmp.eq.s32.totalorder %s12, 0
      %p53 = por %p51, %p52
      %p54 = scmp.ne.s32.totalorder %s46, %s48
      %p55 = scmp.eq.s32.totalorder %s17, 3
      %p56 = por %p54, %p55
      %p57 = scmp.ne.s32.totalorder %s48, %s49
      %p58 = scmp.eq.s32.totalorder %s17, 0
      %p59 = por %p57, %p58
      %p60 = scmp.ne.s32.totalorder %s48, %s49
      %p61 = scmp.eq.s32.totalorder %s18, 3
      %p62 = por %p60, %p61
      %p64 = scmp.ne.s32.totalorder %s49, %s63
      %p65 = scmp.eq.s32.totalorder %s18, 0
      %p66 = por %p64, %p65
      %s68 = sadd.s32 %s67, 1
      %p71 = scmp.eq.s32.totalorder %s12, 3
      %p72 = scmp.ne.s32.totalorder %s67, %s69
      %p73 = scmp.eq.s32.totalorder %s12, 0
      %p74 = por %p72, %p73
      %p75 = scmp.ne.s32.totalorder %s67, %s69
      %p76 = scmp.eq.s32.totalorder %s17, 3
      %p77 = por %p75, %p76
      %p78 = scmp.ne.s32.totalorder %s69, %s70
      %p79 = scmp.eq.s32.totalorder %s17, 0
      %p80 = por %p78, %p79
      %p81 = scmp.ne.s32.totalorder %s69, %s70
      %p82 = scmp.eq.s32.totalorder %s18, 3
      %p83 = por %p81, %p82
      %p85 = scmp.ne.s32.totalorder %s70, %s84
      %p86 = scmp.eq.s32.totalorder %s18, 0
      %p87 = por %p85, %p86
      %s88 = ssub.s32 %s12, %s19
      %p89 = scmp.eq.s32.totalorder %s88, 0
      %s91 = sadd.s32 %s90, 1
      %s92 = scalar_select %p89, %s90, %s91
      %p95 = pneg %p89
      %p96 = scmp.eq.s32.totalorder %s12, 3
      %p97 = por %p95, %p96
      %p98 = scmp.ne.s32.totalorder %s90, %s93
      %p99 = scmp.eq.s32.totalorder %s12, 0
      %p100 = por %p98, %p99
      %p101 = scmp.ne.s32.totalorder %s90, %s93
      %p102 = scmp.eq.s32.totalorder %s17, 3
      %p103 = por %p101, %p102
      %p104 = scmp.ne.s32.totalorder %s93, %s94
      %p105 = scmp.eq.s32.totalorder %s17, 0
      %p106 = por %p104, %p105
      %p107 = scmp.ne.s32.totalorder %s93, %s94
      %p108 = scmp.eq.s32.totalorder %s18, 3
      %p109 = por %p107, %p108
      %p111 = scmp.ne.s32.totalorder %s94, %s110
      %p112 = scmp.eq.s32.totalorder %s18, 0
      %p113 = por %p111, %p112
      %p114 = scmp.le.s32.totalorder 1, %s12
      %p115 = scmp.lt.s32.totalorder %s12, 5
      %p116 = pnand %p114, %p115
      %p117 = pneg %p116
      // Predicated region
      $region9: #{tpu_custom_call.1} parent=5 // pred_check
        _
      $region10: #{tpu_custom_call.1} parent=5 // pred_check_branch
        %119 = sbr.rel (%p116) target = $region12
      $region11: #{tpu_custom_call.1} parent=5 // pred_region
        %s120 = ssub.s32 %s12, 1
        // Predicated region
        $region13: #{tpu_custom_call.1} parent=11 // pred_check
          %p121 = pneg %p59
        $region14: #{tpu_custom_call.1} parent=11 // pred_check_branch
          %123 = sbr.rel (%p121) target = $region16
        $region15: #{tpu_custom_call.1} parent=11 // pred_region
          _
        $region16: #{tpu_custom_call.1} parent=11 // pred_fallthru
          _
        // Predicated region
        $region17: #{tpu_custom_call.1} parent=11 // pred_check
          %p124 = pneg %p80
        $region18: #{tpu_custom_call.1} parent=11 // pred_check_branch
          %126 = sbr.rel (%p124) target = $region20
        $region19: #{tpu_custom_call.1} parent=11 // pred_region
          _
        $region20: #{tpu_custom_call.1} parent=11 // pred_fallthru
          _
      $region12: #{tpu_custom_call.1} parent=5 // pred_fallthru
        _
      %p127 = scmp.lt.s32.totalorder %s12, 4
      // Predicated region
      $region21: #{tpu_custom_call.1} parent=5 // pred_check
        %p128 = pneg %p127
      $region22: #{tpu_custom_call.1} parent=5 // pred_check_branch
        %130 = sbr.rel (%p128) target = $region24
      $region23: #{tpu_custom_call.1} parent=5 // pred_region
        // Predicated region
        $region25: #{tpu_custom_call.1} parent=23 // pred_check
          %p131 = pneg %p32
        $region26: #{tpu_custom_call.1} parent=23 // pred_check_branch
          %133 = sbr.rel (%p131) target = $region28
        $region27: #{tpu_custom_call.1} parent=23 // pred_region
          %s134 = smul.u32 16, %s12
          %p135 = scmp.lt.s32.totalorder %s134, 63
          %s136 = scalar_select %p135, %s134, 63
          %s137 = smul.addr %s136, 8
          %s138 = scalar_lea.vmem %s0, %s137
          %s139 = smul.u32 16, %s12
        $region28: #{tpu_custom_call.1} parent=23 // pred_fallthru
          _
      $region24: #{tpu_custom_call.1} parent=5 // pred_fallthru
        _
      %p140 = scmp.le.s32.totalorder 1, %s12
      %p141 = scmp.lt.s32.totalorder %s12, 5
      %p142 = pnand %p140, %p141
      %p143 = pneg %p142
      // Predicated region
      $region29: #{tpu_custom_call.1} parent=5 // pred_check
        _
      $region30: #{tpu_custom_call.1} parent=5 // pred_check_branch
        %145 = sbr.rel (%p142) target = $region32
      $region31: #{tpu_custom_call.1} parent=5 // pred_region
        %s146 = ssub.s32 %s12, 1
        %s147 = smul.u32 16, %s17
        %p148 = scmp.lt.s32.totalorder %s147, 63
        %s149 = scalar_select %p148, %s147, 63
        %s150 = smul.addr %s149, 8
        %s151 = scalar_lea.vmem %s0, %s150
        %p152 = pneg %p38
        %p153 = pneg %p35
        %p154 = pneg %p59
        %p155 = pneg %p56
        %p156 = pneg %p80
        %p157 = pneg %p77
        %p158 = pneg %p106
        %p159 = pneg %p103
        %s160 = sand.u32 %s93, 1
        %s161 = scalar_lea.sflag [#allocation3], %s160
        %s162 = sand.u32 %s93, 1
        %s163 = smul.addr %s162, 64
        %s164 = scalar_lea.vmem [#allocation2], %s163
        %s165 = smul.u32 16, %s17
        %p166 = scmp.lt.s32.totalorder %s165, 63
        %s167 = scalar_select %p166, %s165, 63
        %s168 = smul.addr %s167, 8
        %s169 = scalar_lea.vmem %s0, %s168
        %s170 = smul.u32 16, %s17
        %s171 = smul.u32 16, %s17
        %v173 = vld [vmem:[%s169] sm:$0xff]
        %v174 = vld [vmem:[%s169 + $0x8] sm:$0xff]
        %v175 = vld [vmem:[%s169 + $0x10] sm:$0xff]
        %v176 = vld [vmem:[%s169 + $0x18] sm:$0xff]
        %v177 = vld [vmem:[%s169 + $0x20] sm:$0xff]
        %v178 = vld [vmem:[%s169 + $0x28] sm:$0xff]
        %v179 = vld [vmem:[%s169 + $0x30] sm:$0xff]
        %v180 = vld [vmem:[%s169 + $0x38] sm:$0xff]
        %v181 = vld [vmem:[%s169 + $0x40] sm:$0xff]
        %v182 = vld [vmem:[%s169 + $0x48] sm:$0xff]
        %v183 = vld [vmem:[%s169 + $0x50] sm:$0xff]
        %v184 = vld [vmem:[%s169 + $0x58] sm:$0xff]
        %v185 = vld [vmem:[%s169 + $0x60] sm:$0xff]
        %v186 = vld [vmem:[%s169 + $0x68] sm:$0xff]
        %v187 = vld [vmem:[%s169 + $0x70] sm:$0xff]
        %v188 = vld [vmem:[%s169 + $0x78] sm:$0xff]
        %v189 = vpack.c.bf16 %v174, %v173
        %v190 = vpack.c.bf16 %v176, %v175
        %v191 = vpack.c.bf16 %v178, %v177
        %v192 = vpack.c.bf16 %v180, %v179
        %v193 = vpack.c.bf16 %v182, %v181
        %v194 = vpack.c.bf16 %v184, %v183
        %v195 = vpack.c.bf16 %v186, %v185
        %v196 = vpack.c.bf16 %v188, %v187
        %v197 = vld [vmem:[%s1] sm:$0xf]
        %v198 = vld [vmem:[%s1 + $0x4] sm:$0xf]
        %v199 = vld [vmem:[%s2] sm:$0x1]
        %v201 = vlaneseq
        %v202 = vshrl.u32 %v201, 7
        %v203 = vsub.s32 0, %v202
        %v204 = vrot.slane %v199, %v203
        %v208 = vunpack.c.l.b16 %v197
        %v209 = vunpack.c.l.b16 %v198
        %v210 = vpack.c.b16 %v209, %v208
        %vm212 = vcmask 130048
        %v214 = vsel %vm212, %v189, 0
        %v217 = vsel %vm212, %v190, 0
        %v220 = vsel %vm212, %v191, 0
        %v223 = vsel %vm212, %v192, 0
        %v226 = vsel %vm212, %v193, 0
        %v229 = vsel %vm212, %v194, 0
        %v232 = vsel %vm212, %v195, 0
        %v235 = vsel %vm212, %v196, 0
        %237 = vmatprep.subr.bf16.mxu0 0
        %238 = vmatpush1.bf16.msra.mxu0 0
        %239 = vmatprep.subr.bf16.mxu0 0
        %240 = vmatpush1.bf16.msra.mxu0 0
        %241 = vmatprep.subr.bf16.mxu0 0
        %242 = vmatpush1.bf16.msra.mxu0 0
        %243 = vmatprep.subr.bf16.mxu0 0
        %244 = vmatpush1.bf16.msra.mxu0 0
        %245 = vmatprep.subr.bf16.mxu0 0
        %246 = vmatpush1.bf16.msra.mxu0 0
        %247 = vmatprep.subr.bf16.mxu0 0
        %248 = vmatpush1.bf16.msra.mxu0 0
        %249 = vmatprep.subr.bf16.mxu0 0
        %250 = vmatpush1.bf16.msra.mxu0 0
        %251 = vmatprep.subr.bf16.mxu0 0
        %252 = vmatpush1.bf16.msra.mxu0 %v210
        %253 = vmatprep.subr.bf16.mxu0 0
        %254 = vmatpush2.bf16.msra.mxu0 0
        %255 = vmatprep.subr.bf16.mxu0 0
        %256 = vmatpush2.bf16.msra.mxu0 0
        %257 = vmatprep.subr.bf16.mxu0 0
        %258 = vmatpush2.bf16.msra.mxu0 0
        %259 = vmatprep.subr.bf16.mxu0 0
        %260 = vmatpush2.bf16.msra.mxu0 0
        %261 = vmatprep.subr.bf16.mxu0 0
        %262 = vmatpush2.bf16.msra.mxu0 0
        %263 = vmatprep.subr.bf16.mxu0 0
        %264 = vmatpush2.bf16.msra.mxu0 0
        %265 = vmatprep.subr.bf16.mxu0 0
        %266 = vmatpush2.bf16.msra.mxu0 0
        %267 = vmatprep.subr.bf16.mxu0 0
        %268 = vmatpush2.bf16.msra.mxu0 0
        %269 = vmatprep.mubr.bf16.mxu0 0
        %270 = vmatmul.mubr.bf16.gmra.mxu0 %v214
        %v271 = vpop.f32.mrf.mxu0
        %v272 = vadd.f32 %v204, %v271
        %v273 = vpop.f32.mrf.mxu0
        %v274 = vpop.f32.mrf.mxu0
        %v275 = vadd.f32 %v204, %v274
        %v276 = vpop.f32.mrf.mxu0
        %277 = vmatprep.mubr.bf16.mxu0 0
        %278 = vmatmul.mubr.bf16.gmra.mxu0 %v217
        %v279 = vpop.f32.mrf.mxu0
        %v280 = vadd.f32 %v204, %v279
        %v281 = vpop.f32.mrf.mxu0
        %v282 = vpop.f32.mrf.mxu0
        %v283 = vadd.f32 %v204, %v282
        %v284 = vpop.f32.mrf.mxu0
        %285 = vmatprep.mubr.bf16.mxu0 0
        %286 = vmatmul.mubr.bf16.gmra.mxu0 %v220
        %v287 = vpop.f32.mrf.mxu0
        %v288 = vadd.f32 %v204, %v287
        %v289 = vpop.f32.mrf.mxu0
        %v290 = vpop.f32.mrf.mxu0
        %v291 = vadd.f32 %v204, %v290
        %v292 = vpop.f32.mrf.mxu0
        %293 = vmatprep.mubr.bf16.mxu0 0
        %294 = vmatmul.mubr.bf16.gmra.mxu0 %v223
        %v295 = vpop.f32.mrf.mxu0
        %v296 = vadd.f32 %v204, %v295
        %v297 = vpop.f32.mrf.mxu0
        %v298 = vpop.f32.mrf.mxu0
        %v299 = vadd.f32 %v204, %v298
        %v300 = vpop.f32.mrf.mxu0
        %301 = vmatprep.mubr.bf16.mxu0 0
        %302 = vmatmul.mubr.bf16.gmra.mxu0 %v226
        %v303 = vpop.f32.mrf.mxu0
        %v304 = vadd.f32 %v204, %v303
        %v305 = vpop.f32.mrf.mxu0
        %v306 = vpop.f32.mrf.mxu0
        %v307 = vadd.f32 %v204, %v306
        %v308 = vpop.f32.mrf.mxu0
        %309 = vmatprep.mubr.bf16.mxu0 0
        %310 = vmatmul.mubr.bf16.gmra.mxu0 %v229
        %v311 = vpop.f32.mrf.mxu0
        %v312 = vadd.f32 %v204, %v311
        %v313 = vpop.f32.mrf.mxu0
        %v314 = vpop.f32.mrf.mxu0
        %v315 = vadd.f32 %v204, %v314
        %v316 = vpop.f32.mrf.mxu0
        %317 = vmatprep.mubr.bf16.mxu0 0
        %318 = vmatmul.mubr.bf16.gmra.mxu0 %v232
        %v319 = vpop.f32.mrf.mxu0
        %v320 = vadd.f32 %v204, %v319
        %v321 = vpop.f32.mrf.mxu0
        %v322 = vpop.f32.mrf.mxu0
        %v323 = vadd.f32 %v204, %v322
        %v324 = vpop.f32.mrf.mxu0
        %325 = vmatprep.mubr.bf16.mxu0 0
        %326 = vmatmul.mubr.bf16.gmra.mxu0 %v235
        %v327 = vpop.f32.mrf.mxu0
        %v328 = vadd.f32 %v204, %v327
        %v329 = vpop.f32.mrf.mxu0
        %v330 = vpop.f32.mrf.mxu0
        %v331 = vadd.f32 %v204, %v330
        %v332 = vpop.f32.mrf.mxu0
        %333 = vdwg.mxu0
        %v334 = vmax.f32 %v272, 0.0
        %v335 = vmax.f32 %v275, 0.0
        %v336 = vmax.f32 %v280, 0.0
        %v337 = vmax.f32 %v283, 0.0
        %v338 = vmax.f32 %v288, 0.0
        %v339 = vmax.f32 %v291, 0.0
        %v340 = vmax.f32 %v296, 0.0
        %v341 = vmax.f32 %v299, 0.0
        %v342 = vmax.f32 %v304, 0.0
        %v343 = vmax.f32 %v307, 0.0
        %v344 = vmax.f32 %v312, 0.0
        %v345 = vmax.f32 %v315, 0.0
        %v346 = vmax.f32 %v320, 0.0
        %v347 = vmax.f32 %v323, 0.0
        %v348 = vmax.f32 %v328, 0.0
        %v349 = vmax.f32 %v331, 0.0
        %v350 = vpack.c.bf16 %v335, %v334
        %v351 = vpack.c.bf16 %v337, %v336
        %v352 = vpack.c.bf16 %v339, %v338
        %v353 = vpack.c.bf16 %v341, %v340
        %v354 = vpack.c.bf16 %v343, %v342
        %v355 = vpack.c.bf16 %v345, %v344
        %v356 = vpack.c.bf16 %v347, %v346
        %v357 = vpack.c.bf16 %v349, %v348
        %v366 = vunpack.c.l.b16 %v350
        %v367 = vunpack.c.h.b16 %v350
        %v368 = vunpack.c.l.b16 %v351
        %v369 = vunpack.c.h.b16 %v351
        %v370 = vunpack.c.l.b16 %v352
        %v371 = vunpack.c.h.b16 %v352
        %v372 = vunpack.c.l.b16 %v353
        %v373 = vunpack.c.h.b16 %v353
        %v374 = vunpack.c.l.b16 %v354
        %v375 = vunpack.c.h.b16 %v354
        %v376 = vunpack.c.l.b16 %v355
        %v377 = vunpack.c.h.b16 %v355
        %v378 = vunpack.c.l.b16 %v356
        %v379 = vunpack.c.h.b16 %v356
        %v380 = vunpack.c.l.b16 %v357
        %v381 = vunpack.c.h.b16 %v357
        %v382 = vpack.c.b16 %v366, %v366
        %v383 = vpack.c.b16 %v367, %v367
        %v384 = vpack.c.b16 %v368, %v368
        %v385 = vpack.c.b16 %v369, %v369
        %v386 = vpack.c.b16 %v370, %v370
        %v387 = vpack.c.b16 %v371, %v371
        %v388 = vpack.c.b16 %v372, %v372
        %v389 = vpack.c.b16 %v373, %v373
        %v390 = vpack.c.b16 %v374, %v374
        %v391 = vpack.c.b16 %v375, %v375
        %v392 = vpack.c.b16 %v376, %v376
        %v393 = vpack.c.b16 %v377, %v377
        %v394 = vpack.c.b16 %v378, %v378
        %v395 = vpack.c.b16 %v379, %v379
        %v396 = vpack.c.b16 %v380, %v380
        %v397 = vpack.c.b16 %v381, %v381
        %414 = vst [vmem:[%s164] sm:$0xf] %v382
        %415 = vst [vmem:[%s164 + $0x4] sm:$0xf] %v383
        %416 = vst [vmem:[%s164 + $0x8] sm:$0xf] %v384
        %417 = vst [vmem:[%s164 + $0xc] sm:$0xf] %v385
        %418 = vst [vmem:[%s164 + $0x10] sm:$0xf] %v386
        %419 = vst [vmem:[%s164 + $0x14] sm:$0xf] %v387
        %420 = vst [vmem:[%s164 + $0x18] sm:$0xf] %v388
        %421 = vst [vmem:[%s164 + $0x1c] sm:$0xf] %v389
        %422 = vst [vmem:[%s164 + $0x20] sm:$0xf] %v390
        %423 = vst [vmem:[%s164 + $0x24] sm:$0xf] %v391
        %424 = vst [vmem:[%s164 + $0x28] sm:$0xf] %v392
        %425 = vst [vmem:[%s164 + $0x2c] sm:$0xf] %v393
        %426 = vst [vmem:[%s164 + $0x30] sm:$0xf] %v394
        %427 = vst [vmem:[%s164 + $0x34] sm:$0xf] %v395
        %428 = vst [vmem:[%s164 + $0x38] sm:$0xf] %v396
        %429 = vst [vmem:[%s164 + $0x3c] sm:$0xf] %v397
        %s430 = sand.u32 %s93, 1
        %s431 = scalar_lea.sflag [#allocation3], %s430
        %s432 = sand.u32 %s93, 1
        %s433 = smul.addr %s432, 64
        %s434 = scalar_lea.vmem [#allocation2], %s433
        // Predicated region
        $region33: #{tpu_custom_call.1} parent=31 // pred_check
          %p435 = pneg %p103
        $region34: #{tpu_custom_call.1} parent=31 // pred_check_branch
          %437 = sbr.rel (%p435) target = $region36
        $region35: #{tpu_custom_call.1} parent=31 // pred_region
          %s438 = smul.u32 16, %s17
          %s440 = ssub.s32 1024, 1024
          %441 = vsyncadd %s431, %s440
          %s442 = smul.addr %s438, 64
          %s443 = scalar_lea.hbm %s3, %s442
          %s444 = sshll.u32 %s434, 4
          %s445 = int_to_ptr.vmem [resolvable:$true] %s444
          %450 = dma.vmem_to_hbm [thread:$0]  %s445, 1024, %s443, %s431, 64, 64, 4
        $region36: #{tpu_custom_call.1} parent=31 // pred_fallthru
          _
      $region32: #{tpu_custom_call.1} parent=5 // pred_fallthru
        _
      %p451 = scmp.le.s32.totalorder 2, %s12
      // Predicated region
      $region37: #{tpu_custom_call.1} parent=5 // pred_check
        %p452 = pneg %p451
      $region38: #{tpu_custom_call.1} parent=5 // pred_check_branch
        %454 = sbr.rel (%p452) target = $region40
      $region39: #{tpu_custom_call.1} parent=5 // pred_region
        %s455 = ssub.s32 %s12, 2
        // Predicated region
        $region41: #{tpu_custom_call.1} parent=39 // pred_check
          %p456 = pneg %p109
        $region42: #{tpu_custom_call.1} parent=39 // pred_check_branch
          %458 = sbr.rel (%p456) target = $region44
        $region43: #{tpu_custom_call.1} parent=39 // pred_region
          %s459 = sand.u32 %s94, 1
          %s460 = scalar_lea.sflag [#allocation3], %s459
          %s461 = sand.u32 %s94, 1
          %s462 = smul.addr %s461, 64
          %s463 = scalar_lea.vmem [#allocation2], %s462
          %464 = dma.done %s460, 1024
        $region44: #{tpu_custom_call.1} parent=39 // pred_fallthru
          _
      $region40: #{tpu_custom_call.1} parent=5 // pred_fallthru
        _
    $region6: #{tpu_custom_call.1} parent=1 // loop_footer
      %s16 = sadd.s32 1, %s12
    $region7: #{tpu_custom_call.1} parent=1 // loop_footer_branch
      %11 = sbr.rel target = $region3
    $region8: #{tpu_custom_call.1} parent=1 // loop_exit
      _
    %465 = vsyncpa [#allocation3], 1
    %s466 = scalar_lea.sflag [#allocation3], 1
    %467 = vsyncpa %s466, 1

</llo_original>
